<compile_context>
chip_gen: v7x
topology: tpu7x:2x2x1
jax: 0.10.0
libtpu: 0.0.40
codegen_flags: <defaults>
</compile_context>

<pallas_src>
import math
from functools import partial

import jax
import jax.numpy as jnp
from jax import lax
from jax.experimental import pallas as pl
from jax.experimental.pallas import tpu as pltpu


# ----------------------------------------------------------------------------
# Generation-aware VMEM budget & default tiles
# ----------------------------------------------------------------------------
def _detect_vmem_capacity():
    try:
        cap = int(pltpu.get_tpu_info().vmem_capacity_bytes)
        if cap > 0:
            return cap
    except Exception:
        pass
    return 64 * 1024 * 1024  # conservative default (v7x per-TensorCore)


_VMEM_CAP = _detect_vmem_capacity()
# Leave headroom for double-buffered blocks + Mosaic internal scratch.
_VMEM_LIMIT = min(int(0.6 * _VMEM_CAP), 96 * 1024 * 1024)
# Bigger row tiles on 128 MiB parts (v5e/v6e); smaller on 64 MiB v7x.
_DEFAULT_TM = 512 if _VMEM_CAP >= (96 << 20) else 256


def _tile(dim, target, align=128):
    """Tile for a weight (K/N) axis: full dim if small, else the largest
    `align`-multiple divisor of dim that is <= target (BERT hidden dims are
    multiples of 128 so this never degenerates to full-dim at real sizes)."""
    if dim <= target:
        return dim
    if dim % target == 0:
        return target
    t = (target // align) * align
    while t >= align:
        if dim % t == 0:
            return t
        t -= align
    return dim


def _row_tile(M, target):
    """Row tile: full rows if small, else `target` with padding handled by
    the wrapper (no silent giant-block fallback)."""
    return M if M <= target else target


def _pad_rows(x, tm):
    M = x.shape[0]
    pad = (-M) % tm
    if pad:
        x = jnp.pad(x, ((0, pad), (0, 0)))
    return x, M


def _gelu_tanh(x):
    # tanh-approx GELU (EUP-friendly).
    # TODO(synk): HF BERT default "gelu" is the exact erf form; tiny mismatch.
    c = math.sqrt(2.0 / math.pi)
    return 0.5 * x * (1.0 + jnp.tanh(c * (x + 0.044715 * x * x * x)))


def _ln(y, g, b, eps=1e-12):
    mean = jnp.mean(y, axis=-1, keepdims=True)
    var = jnp.mean((y - mean) ** 2, axis=-1, keepdims=True)
    inv = lax.rsqrt(var + eps)
    return (y - mean) * inv * g + b


# ----------------------------------------------------------------------------
# Tiled linear:  y = act(x @ w + b)      (bf16 operands, f32 accumulation)
# ----------------------------------------------------------------------------
def _linear_kernel(x_ref, w_ref, b_ref, o_ref, acc_ref, *, activation):
    k = pl.program_id(2)

    @pl.when(k == 0)
    def _():
        acc_ref[...] = jnp.zeros_like(acc_ref)

    acc_ref[...] += jnp.dot(x_ref[...], w_ref[...],
                            preferred_element_type=jnp.float32)

    @pl.when(k == pl.num_programs(2) - 1)
    def _():
        y = acc_ref[...] + b_ref[...]
        if activation == "gelu":
            y = _gelu_tanh(y)
        elif activation == "tanh":
            y = jnp.tanh(y)
        o_ref[...] = y.astype(o_ref.dtype)


def linear(x, w, b, activation=None, *, tm=None, tn=256, tk=512,
           out_dtype=jnp.bfloat16):
    """x:(M,K) w:(K,N) b:(N,) -> (M,N) in out_dtype."""
    tm = _DEFAULT_TM if tm is None else tm
    x = x.astype(jnp.bfloat16)
    w = w.astype(jnp.bfloat16)
    M0, K = x.shape
    _, N = w.shape
    tm = _row_tile(M0, tm)
    x, M0 = _pad_rows(x, tm)
    M = x.shape[0]
    tn, tk = _tile(N, tn), _tile(K, tk)
    out = pl.pallas_call(
        partial(_linear_kernel, activation=activation),
        out_shape=jax.ShapeDtypeStruct((M, N), out_dtype),
        grid=(M // tm, N // tn, K // tk),
        in_specs=[
            pl.BlockSpec((tm, tk), lambda i, j, k: (i, k)),
            pl.BlockSpec((tk, tn), lambda i, j, k: (k, j)),
            pl.BlockSpec((1, tn), lambda i, j, k: (0, j)),
        ],
        out_specs=pl.BlockSpec((tm, tn), lambda i, j, k: (i, j)),
        scratch_shapes=[pltpu.VMEM((tm, tn), jnp.float32)],
        compiler_params=pltpu.CompilerParams(
            dimension_semantics=("parallel", "parallel", "arbitrary"),
            vmem_limit_bytes=_VMEM_LIMIT),
    )(x, w, b.astype(jnp.float32).reshape(1, N))
    return out[:M0]


# ----------------------------------------------------------------------------
# Row-tiled LayerNorm
# ----------------------------------------------------------------------------
def _layernorm_kernel(x_ref, g_ref, b_ref, o_ref):
    x = x_ref[...].astype(jnp.float32)
    o_ref[...] = _ln(x, g_ref[...], b_ref[...]).astype(o_ref.dtype)


def layernorm(x, gamma, beta, *, tm=None, out_dtype=jnp.bfloat16):
    tm = _DEFAULT_TM if tm is None else tm
    M0, H = x.shape
    tm = _row_tile(M0, tm)
    x, M0 = _pad_rows(x, tm)
    M = x.shape[0]
    out = pl.pallas_call(
        _layernorm_kernel,
        out_shape=jax.ShapeDtypeStruct((M, H), out_dtype),
        grid=(M // tm,),
        in_specs=[
            pl.BlockSpec((tm, H), lambda i: (i, 0)),
            pl.BlockSpec((1, H), lambda i: (0, 0)),
            pl.BlockSpec((1, H), lambda i: (0, 0)),
        ],
        out_specs=pl.BlockSpec((tm, H), lambda i: (i, 0)),
        compiler_params=pltpu.CompilerParams(
            dimension_semantics=("parallel",),
            vmem_limit_bytes=_VMEM_LIMIT),
    )(x, gamma.reshape(1, H), beta.reshape(1, H))
    return out[:M0]


# ----------------------------------------------------------------------------
# Fused: projection + bias + residual + LayerNorm  (attention output path)
# ----------------------------------------------------------------------------
def _proj_res_ln_kernel(x_ref, res_ref, w_ref, b_ref, g_ref, be_ref, o_ref):
    y = jnp.dot(x_ref[...], w_ref[...], preferred_element_type=jnp.float32)
    y = y + b_ref[...] + res_ref[...].astype(jnp.float32)
    o_ref[...] = _ln(y, g_ref[...], be_ref[...]).astype(o_ref.dtype)


def proj_residual_layernorm(x, residual, w, b, gamma, beta, *, tm=None):
    tm = _DEFAULT_TM if tm is None else tm
    x = x.astype(jnp.bfloat16)
    residual = residual.astype(jnp.bfloat16)
    w = w.astype(jnp.bfloat16)
    M0, K = x.shape
    _, H = w.shape
    tm = _row_tile(M0, tm)
    x, M0 = _pad_rows(x, tm)
    residual, _ = _pad_rows(residual, tm)
    M = x.shape[0]
    out = pl.pallas_call(
        _proj_res_ln_kernel,
        out_shape=jax.ShapeDtypeStruct((M, H), jnp.bfloat16),
        grid=(M // tm,),
        in_specs=[
            pl.BlockSpec((tm, K), lambda i: (i, 0)),
            pl.BlockSpec((tm, H), lambda i: (i, 0)),
            pl.BlockSpec((K, H), lambda i: (0, 0)),
            pl.BlockSpec((1, H), lambda i: (0, 0)),
            pl.BlockSpec((1, H), lambda i: (0, 0)),
            pl.BlockSpec((1, H), lambda i: (0, 0)),
        ],
        out_specs=pl.BlockSpec((tm, H), lambda i: (i, 0)),
        compiler_params=pltpu.CompilerParams(
            dimension_semantics=("parallel",),
            vmem_limit_bytes=_VMEM_LIMIT),
    )(x, residual, w, b.reshape(1, H), gamma.reshape(1, H), beta.reshape(1, H))
    return out[:M0]


# ----------------------------------------------------------------------------
# Fused FFN: LN(x + W2 @ gelu(W1 @ x + b1) + b2)
# Intermediate dim I is tiled ("arbitrary" axis): per step we compute a
# (tm, ti) chunk of gelu(x@W1+b1) and accumulate its @W2[chunk,:] into a f32
# VMEM scratch.  Weights are streamed in ti-sized slabs, never loaded whole.
# ----------------------------------------------------------------------------
def _ffn_ln_kernel(x_ref, w1_ref, b1_ref, w2_ref, b2_ref, g_ref, be_ref,
                   o_ref, acc_ref):
    kk = pl.program_id(1)

    @pl.when(kk == 0)
    def _():
        acc_ref[...] = jnp.zeros_like(acc_ref)

    x = x_ref[...]                                                 # (tm, H) bf16
    h = jnp.dot(x, w1_ref[...], preferred_element_type=jnp.float32) + b1_ref[...]
    h = _gelu_tanh(h)
    acc_ref[...] += jnp.dot(h.astype(jnp.bfloat16), w2_ref[...],
                            preferred_element_type=jnp.float32)

    @pl.when(kk == pl.num_programs(1) - 1)
    def _():
        y = acc_ref[...] + b2_ref[...] + x.astype(jnp.float32)     # residual
        o_ref[...] = _ln(y, g_ref[...], be_ref[...]).astype(o_ref.dtype)


def ffn_residual_layernorm(x, w1, b1, w2, b2, gamma, beta, *, tm=None, ti=512):
    tm = _DEFAULT_TM if tm is None else tm
    x = x.astype(jnp.bfloat16)
    w1 = w1.astype(jnp.bfloat16)
    w2 = w2.astype(jnp.bfloat16)
    M0, H = x.shape
    _, I = w1.shape
    tm = _row_tile(M0, tm)
    x, M0 = _pad_rows(x, tm)
    M = x.shape[0]
    ti = _tile(I, ti)
    out = pl.pallas_call(
        _ffn_ln_kernel,
        out_shape=jax.ShapeDtypeStruct((M, H), jnp.bfloat16),
        grid=(M // tm, I // ti),
        in_specs=[
            pl.BlockSpec((tm, H), lambda i, k: (i, 0)),
            pl.BlockSpec((H, ti), lambda i, k: (0, k)),
            pl.BlockSpec((1, ti), lambda i, k: (0, k)),
            pl.BlockSpec((ti, H), lambda i, k: (k, 0)),
            pl.BlockSpec((1, H), lambda i, k: (0, 0)),
            pl.BlockSpec((1, H), lambda i, k: (0, 0)),
            pl.BlockSpec((1, H), lambda i, k: (0, 0)),
        ],
        out_specs=pl.BlockSpec((tm, H), lambda i, k: (i, 0)),
        scratch_shapes=[pltpu.VMEM((tm, H), jnp.float32)],
        compiler_params=pltpu.CompilerParams(
            dimension_semantics=("parallel", "arbitrary"),
            vmem_limit_bytes=_VMEM_LIMIT),
    )(x, w1, b1.reshape(1, I), w2, b2.reshape(1, H),
      gamma.reshape(1, H), beta.reshape(1, H))
    return out[:M0]


# ----------------------------------------------------------------------------
# Multi-head attention: grid=(B, nH), one (batch, head) slab per grid step.
# Q/K/V arrive pre-split as (B, nH, S, hd) (plain-JAX reshape/transpose glue),
# so there is no sub-vreg slicing or per-head Python unroll inside the kernel.
# Softmax probabilities are cast to bf16 before the PV matmul.
# TODO(synk): for S > ~512 switch to a KV-tiled online-softmax (flash) layout;
# one-shot softmax is fine at these sequence lengths.
# ----------------------------------------------------------------------------
def _attention_kernel(q_ref, k_ref, v_ref, m_ref, o_ref, *, scale):
    q = q_ref[0, 0]                                # (S, hd) bf16
    k = k_ref[0, 0]
    v = v_ref[0, 0]
    m = m_ref[...]                                 # (1, S) additive mask, f32
    s = lax.dot_general(q, k, (((1,), (1,)), ((), ())),
                        preferred_element_type=jnp.float32) * scale
    s = s + m                                      # broadcast over query rows
    s = s - jnp.max(s, axis=-1, keepdims=True)
    p = jnp.exp(s)
    p = p * pl.reciprocal(jnp.sum(p, axis=-1, keepdims=True), approx=True)
    o_ref[0, 0] = jnp.dot(p.astype(v.dtype), v,
                          preferred_element_type=jnp.float32).astype(o_ref.dtype)


def mha_attention(q, k, v, add_mask, scale):
    """q/k/v: (B, nH, S, hd) bf16, add_mask: (B, S) additive -> (B, nH, S, hd)."""
    B, nH, S, hd = q.shape
    head_spec = pl.BlockSpec((1, 1, S, hd), lambda b, h: (b, h, 0, 0))
    return pl.pallas_call(
        partial(_attention_kernel, scale=scale),
        out_shape=jax.ShapeDtypeStruct((B, nH, S, hd), jnp.bfloat16),
        grid=(B, nH),
        in_specs=[
            head_spec, head_spec, head_spec,
            pl.BlockSpec((1, S), lambda b, h: (b, 0)),
        ],
        out_specs=head_spec,
        compiler_params=pltpu.CompilerParams(
            dimension_semantics=("parallel", "parallel"),
            vmem_limit_bytes=_VMEM_LIMIT),
    )(q, k, v, add_mask)


# ----------------------------------------------------------------------------
# Fused tail: pooler(tanh) -> dropout(eval=identity) -> classification head
# (tiny (B,H) tail — one launch; negligible vs. the encoder, so the single
#  grid step is acceptable even on 2-TensorCore parts)
# ----------------------------------------------------------------------------
def _pooler_head_kernel(cls_ref, wp_ref, bp_ref, wo_ref, bo_ref, o_ref):
    pooled = jnp.tanh(
        jnp.dot(cls_ref[...], wp_ref[...], preferred_element_type=jnp.float32)
        + bp_ref[...])
    # dropout (eval mode) -> identity
    logits = jnp.dot(pooled.astype(jnp.bfloat16), wo_ref[...],
                     preferred_element_type=jnp.float32) + bo_ref[...]
    o_ref[...] = logits.astype(o_ref.dtype)


def pooler_head(cls, wp, bp, wo, bo):
    cls = cls.astype(jnp.bfloat16)
    wp = wp.astype(jnp.bfloat16)
    wo = wo.astype(jnp.bfloat16)
    B, H = cls.shape
    O = wo.shape[1]
    return pl.pallas_call(
        _pooler_head_kernel,
        out_shape=jax.ShapeDtypeStruct((B, O), jnp.float32),
        grid=(1,),
        in_specs=[
            pl.BlockSpec((B, H), lambda i: (0, 0)),
            pl.BlockSpec((H, H), lambda i: (0, 0)),
            pl.BlockSpec((1, H), lambda i: (0, 0)),
            pl.BlockSpec((H, O), lambda i: (0, 0)),
            pl.BlockSpec((1, O), lambda i: (0, 0)),
        ],
        out_specs=pl.BlockSpec((B, O), lambda i: (0, 0)),
        compiler_params=pltpu.CompilerParams(vmem_limit_bytes=_VMEM_LIMIT),
    )(cls, wp, bp.reshape(1, H), wo, bo.reshape(1, O))


# ----------------------------------------------------------------------------
# Parameter construction (deterministic, synthetic)
# ----------------------------------------------------------------------------
class Cfg:
    vocab_size = 128
    hidden = 32
    num_layers = 2
    num_heads = 4
    intermediate = 64
    max_position = 16
    type_vocab = 2
    out_features = 4
    dropout = 0.1  # eval mode -> identity


def init_params(key, cfg):
    H, I = cfg.hidden, cfg.intermediate

    def dense(key, k, n):
        k1, k2 = jax.random.split(key)
        # Weights stored in bf16 (bf16 MXU datapath); biases in f32.
        w = (0.02 * jax.random.normal(k1, (k, n), jnp.float32)).astype(jnp.bfloat16)
        b = 0.02 * jax.random.normal(k2, (n,), jnp.float32)
        return {"w": w, "b": b}

    keys = iter(jax.random.split(key, 64))
    p = {
        "word_emb": 0.02 * jax.random.normal(next(keys), (cfg.vocab_size, H), jnp.float32),
        "pos_emb": 0.02 * jax.random.normal(next(keys), (cfg.max_position, H), jnp.float32),
        "type_emb": 0.02 * jax.random.normal(next(keys), (cfg.type_vocab, H), jnp.float32),
        "emb_ln_g": jnp.ones((H,), jnp.float32),
        "emb_ln_b": jnp.zeros((H,), jnp.float32),
        "layers": [],
        "pooler": dense(next(keys), H, H),
        "out": dense(next(keys), H, cfg.out_features),
    }
    for _ in range(cfg.num_layers):
        layer = {
            "qkv": dense(next(keys), H, 3 * H),      # fused Q/K/V projection
            "attn_out": dense(next(keys), H, H),
            "attn_ln_g": jnp.ones((H,), jnp.float32),
            "attn_ln_b": jnp.zeros((H,), jnp.float32),
            "ffn_in": dense(next(keys), H, I),
            "ffn_out": dense(next(keys), I, H),
            "ffn_ln_g": jnp.ones((H,), jnp.float32),
            "ffn_ln_b": jnp.zeros((H,), jnp.float32),
        }
        p["layers"].append(layer)
    return p


# ----------------------------------------------------------------------------
# Forward pass (matches Bert.forward: pooler output -> dropout -> linear head)
# ----------------------------------------------------------------------------
def bert_forward(params, ids, mask, cfg):
    B, S = ids.shape
    H, nH = cfg.hidden, cfg.num_heads
    hd = H // nH
    scale = 1.0 / math.sqrt(hd)

    # --- embeddings (gather = glue) ---
    # TODO(synk): token_type ids hard-coded to 0 (matches calling bert(x, mask)).
    x = (jnp.take(params["word_emb"], ids, axis=0)
         + params["pos_emb"][:S][None, :, :]
         + params["type_emb"][0][None, None, :])               # (B, S, H) f32
    x = layernorm(x.reshape(B * S, H), params["emb_ln_g"], params["emb_ln_b"])
    # x is now the bf16 residual stream, shape (B*S, H)

    add_mask = (1.0 - mask.astype(jnp.float32)) * -1e9          # (B, S)

    # --- encoder layers ---
    for lyr in params["layers"]:
        qkv = linear(x, lyr["qkv"]["w"], lyr["qkv"]["b"])        # (B*S, 3H) bf16
        # split heads (plain-JAX layout glue, stays bf16)
        qkv = qkv.reshape(B, S, 3, nH, hd)
        q = jnp.transpose(qkv[:, :, 0], (0, 2, 1, 3))            # (B, nH, S, hd)
        k = jnp.transpose(qkv[:, :, 1], (0, 2, 1, 3))
        v = jnp.transpose(qkv[:, :, 2], (0, 2, 1, 3))

        ctx = mha_attention(q, k, v, add_mask, scale)            # (B, nH, S, hd)
        ctx = jnp.transpose(ctx, (0, 2, 1, 3)).reshape(B * S, H)

        # attn_out projection + bias + residual + LayerNorm fused
        x = proj_residual_layernorm(ctx, x,
                                    lyr["attn_out"]["w"], lyr["attn_out"]["b"],
                                    lyr["attn_ln_g"], lyr["attn_ln_b"])

        # ffn_in(gelu) + ffn_out + bias + residual + LayerNorm fused (I tiled)
        x = ffn_residual_layernorm(x,
                                   lyr["ffn_in"]["w"], lyr["ffn_in"]["b"],
                                   lyr["ffn_out"]["w"], lyr["ffn_out"]["b"],
                                   lyr["ffn_ln_g"], lyr["ffn_ln_b"])

    # --- pooler([CLS]) -> dropout(eval) -> classification head, one kernel ---
    # TODO(synk): training-mode dropout (nn.Dropout) not applied; eval semantics.
    cls = x.reshape(B, S, H)[:, 0, :]                            # (B, H)
    logits = pooler_head(cls, params["pooler"]["w"], params["pooler"]["b"],
                         params["out"]["w"], params["out"]["b"])
    return logits


# ----------------------------------------------------------------------------
if __name__ == "__main__":
    cfg = Cfg()
    key = jax.random.PRNGKey(0)
    k_param, k_ids = jax.random.split(key)

    params = init_params(k_param, cfg)

    B, S = 2, 8
    ids = jax.random.randint(k_ids, (B, S), 0, cfg.vocab_size, dtype=jnp.int32)
    mask = jnp.ones((B, S), jnp.int32)

    out = bert_forward(params, ids, mask, cfg)
    out = jax.block_until_ready(out)
    assert out.shape == (B, cfg.out_features)
    assert bool(jnp.all(jnp.isfinite(out)))
    print("KERNEL_OK")
</pallas_src>

<mosaic_0001>
module attributes {stable_mosaic.version = 11 : i64} {
  func.func @_layernorm_kernel(%arg0: i32, %arg1: memref<16x32xf32, #tpu.memory_space<vmem>>, %arg2: memref<1x32xf32, #tpu.memory_space<vmem>>, %arg3: memref<1x32xf32, #tpu.memory_space<vmem>>, %arg4: memref<16x32xbf16, #tpu.memory_space<vmem>>) attributes {dimension_semantics = [#tpu.dimension_semantics<parallel>], iteration_bounds = array<i64: 1>, scalar_prefetch = 0 : i64, scratch_operands = 0 : i64, tpu.core_type = #tpu.core_type<tc>, window_params = [{transform_indices = @transform_0, window_bounds = array<i64: 16, 32>}, {pipeline_mode = #tpu.pipeline_mode<synchronous>, transform_indices = @transform_1, window_bounds = array<i64: 1, 32>}, {pipeline_mode = #tpu.pipeline_mode<synchronous>, transform_indices = @transform_2, window_bounds = array<i64: 1, 32>}, {transform_indices = @transform_3, window_bounds = array<i64: 16, 32>}]} {
    %c0 = arith.constant 0 : index
    %c0_0 = arith.constant 0 : index
    %0 = vector.load %arg1[%c0, %c0_0] : memref<16x32xf32, #tpu.memory_space<vmem>>, vector<16x32xf32>
    %c0_1 = arith.constant 0 : index
    %c0_2 = arith.constant 0 : index
    %1 = vector.load %arg2[%c0_1, %c0_2] : memref<1x32xf32, #tpu.memory_space<vmem>>, vector<1x32xf32>
    %c0_3 = arith.constant 0 : index
    %c0_4 = arith.constant 0 : index
    %2 = vector.load %arg3[%c0_3, %c0_4] : memref<1x32xf32, #tpu.memory_space<vmem>>, vector<1x32xf32>
    %cst = arith.constant dense<0.000000e+00> : vector<16xf32>
    %3 = vector.multi_reduction <add>, %0, %cst [1] : vector<16x32xf32> to vector<16xf32>
    %4 = vector.shape_cast %3 : vector<16xf32> to vector<16x1xf32>
    %cst_5 = arith.constant 3.200000e+01 : f32
    %5 = vector.broadcast %cst_5 : f32 to vector<16x1xf32>
    %6 = arith.divf %4, %5 : vector<16x1xf32>
    %7 = vector.broadcast %6 : vector<16x1xf32> to vector<16x32xf32>
    %8 = arith.subf %0, %7 : vector<16x32xf32>
    %9 = arith.mulf %8, %8 : vector<16x32xf32>
    %cst_6 = arith.constant dense<0.000000e+00> : vector<16xf32>
    %10 = vector.multi_reduction <add>, %9, %cst_6 [1] : vector<16x32xf32> to vector<16xf32>
    %11 = vector.shape_cast %10 : vector<16xf32> to vector<16x1xf32>
    %cst_7 = arith.constant 3.200000e+01 : f32
    %12 = vector.broadcast %cst_7 : f32 to vector<16x1xf32>
    %13 = arith.divf %11, %12 : vector<16x1xf32>
    %cst_8 = arith.constant 9.99999996E-13 : f32
    %14 = vector.broadcast %cst_8 : f32 to vector<16x1xf32>
    %15 = arith.addf %13, %14 : vector<16x1xf32>
    %16 = math.rsqrt %15 : vector<16x1xf32>
    %17 = vector.broadcast %6 : vector<16x1xf32> to vector<16x32xf32>
    %18 = arith.subf %0, %17 : vector<16x32xf32>
    %19 = vector.broadcast %16 : vector<16x1xf32> to vector<16x32xf32>
    %20 = arith.mulf %18, %19 : vector<16x32xf32>
    %21 = vector.broadcast %1 : vector<1x32xf32> to vector<16x32xf32>
    %22 = arith.mulf %20, %21 : vector<16x32xf32>
    %23 = vector.broadcast %2 : vector<1x32xf32> to vector<16x32xf32>
    %24 = arith.addf %22, %23 : vector<16x32xf32>
    %25 = arith.truncf %24 : vector<16x32xf32> to vector<16x32xbf16>
    %c0_9 = arith.constant 0 : index
    %c0_10 = arith.constant 0 : index
    %26 = vector.load %arg4[%c0_9, %c0_10] : memref<16x32xbf16, #tpu.memory_space<vmem>>, vector<16x32xbf16>
    tpu.vector_store %arg4[%c0_9, %c0_10], %25 {strides = array<i32>} : memref<16x32xbf16, #tpu.memory_space<vmem>>, vector<16x32xbf16>,
    return
  }
  func.func @transform_0(%arg0: i32) -> (i32, i32) {
    %c0_i32 = arith.constant 0 : i32
    %c0_i32_0 = arith.constant 0 : i32
    return %arg0, %c0_i32 : i32, i32
  }
  func.func @transform_1(%arg0: i32) -> (i32, i32) {
    %c0_i32 = arith.constant 0 : i32
    %c0_i32_0 = arith.constant 0 : i32
    %c0_i32_1 = arith.constant 0 : i32
    return %c0_i32, %c0_i32_0 : i32, i32
  }
  func.func @transform_2(%arg0: i32) -> (i32, i32) {
    %c0_i32 = arith.constant 0 : i32
    %c0_i32_0 = arith.constant 0 : i32
    %c0_i32_1 = arith.constant 0 : i32
    return %c0_i32, %c0_i32_0 : i32, i32
  }
  func.func @transform_3(%arg0: i32) -> (i32, i32) {
    %c0_i32 = arith.constant 0 : i32
    %c0_i32_0 = arith.constant 0 : i32
    return %arg0, %c0_i32 : i32, i32
  }
}

</mosaic_0001>

<llo_original>
// kernel: tpu_custom_call.1
$region0: #{tpu_custom_call.1}
  #allocation0 [shape = 'u32[]', space=smem, size = 0x4, offset = 0x4, fixed_abs, tag = 'smem constant byte address 0x4 - core index']
  #allocation1 [shape = 'u32[144,128]{1,0:T(1,128)}', space=vmem, size = 0x12000, scoped, tag = 'internal scratch']
  %s0 = inlined_call_operand.hbm [shape: f32[16,32], index: 0, kind: input, shape index: {}]
  %s1 = inlined_call_operand.vmem [shape: f32[1,32], index: 1, kind: input, shape index: {}]
  %s2 = inlined_call_operand.vmem [shape: f32[1,32], index: 2, kind: input, shape index: {}]
  %s3 = inlined_call_operand.hbm [shape: bf16[16,32], index: 3, kind: output, shape index: {}]
  %s4 = sld [smem:[#allocation0]]
  $region26: #{tpu_custom_call.1} parent=0
    _
  %s6 = ssub.s32 1, %s4
  %s7 = scalar_select 0, %s6, %s4
  $region1: #{tpu_custom_call.1} parent=0
    #allocation2 [shape = 'u8[8192]{0}', space=vmem, size = 0x2000, scoped, tag = 'input window, operand 0, single buffered']
    #allocation3 [shape = 's32[1]{0}', space=sflag, size = 0x4, scoped, tag = 'scoped memory for tpu_custom_call.1']
    #allocation4 [shape = 's32[1]{0}', space=sflag, size = 0x4, scoped, tag = 'scoped memory for tpu_custom_call.1']
    #allocation5 [shape = 'u8[4096]{0}', space=vmem, size = 0x1000, scoped, tag = 'output window, operand 0, single buffered']
    %8 = vsyncpa [#allocation3], 0
    %9 = vsyncpa [#allocation4], 0
    // Predicated region
    $region2: #{tpu_custom_call.1} parent=1 // pred_check
      _
    $region3: #{tpu_custom_call.1} parent=1 // pred_check_branch
      %11 = sbr.rel (0) target = $region5
    $region4: #{tpu_custom_call.1} parent=1 // pred_region
      %s13 = ssub.s32 256, 256
      %14 = vsyncadd [#allocation3], %s13
      %s15 = sshll.u32 [#allocation2], 4
      %s16 = int_to_ptr.vmem [resolvable:$true] %s15
      %21 = dma.hbm_to_vmem [thread:$0]  %s0, 256, %s16, [#allocation3], 128, 128, 8
    $region5: #{tpu_custom_call.1} parent=1 // pred_fallthru
      _
    // Predicated region
    $region6: #{tpu_custom_call.1} parent=1 // pred_check
      _
    $region7: #{tpu_custom_call.1} parent=1 // pred_check_branch
      %23 = sbr.rel (0) target = $region9
    $region8: #{tpu_custom_call.1} parent=1 // pred_region
      _
    $region9: #{tpu_custom_call.1} parent=1 // pred_fallthru
      _
    // Predicated region
    $region10: #{tpu_custom_call.1} parent=1 // pred_check
      _
    $region11: #{tpu_custom_call.1} parent=1 // pred_check_branch
      %25 = sbr.rel (0) target = $region13
    $region12: #{tpu_custom_call.1} parent=1 // pred_region
      _
    $region13: #{tpu_custom_call.1} parent=1 // pred_fallthru
      _
    // Predicated region
    $region14: #{tpu_custom_call.1} parent=1 // pred_check
      _
    $region15: #{tpu_custom_call.1} parent=1 // pred_check_branch
      %27 = sbr.rel (0) target = $region17
    $region16: #{tpu_custom_call.1} parent=1 // pred_region
      %28 = dma.done [#allocation3], 256
    $region17: #{tpu_custom_call.1} parent=1 // pred_fallthru
      _
    %v29 = vld [vmem:[#allocation2] sm:$0xff]
    %v30 = vld [vmem:[#allocation2 + $0x8] sm:$0xff]
    %v31 = vld [vmem:[%s1] sm:$0x1]
    %v32 = vld [vmem:[%s2] sm:$0x1]
    %vm33 = vcmask 261120
    %v34 = vsel %vm33, %v29, 0.0
    %35 = vadd.xlane.f32.xlu0 %v34
    %v36 = vpop.xlane.xlu0 %35
    %v37 = vsel %vm33, %v30, 0.0
    %38 = vadd.xlane.f32.xlu0 %v37
    %v39 = vpop.xlane.xlu0 %38
    %v40 = vrcp.pop 32.0
    %v41 = vmul.f32 %v36, %v40
    %v42 = vmul.f32 %v39, %v40
    %v43 = vsub.f32 %v29, %v41
    %v44 = vsub.f32 %v30, %v42
    %v45 = vmul.f32 %v43, %v43
    %v46 = vmul.f32 %v44, %v44
    %v47 = vsel %vm33, %v45, 0.0
    %48 = vadd.xlane.f32.xlu0 %v47
    %v49 = vpop.xlane.xlu0 %48
    %v50 = vsel %vm33, %v46, 0.0
    %51 = vadd.xlane.f32.xlu0 %v50
    %v52 = vpop.xlane.xlu0 %51
    %v53 = vmul.f32 %v49, %v40
    %v54 = vmul.f32 %v52, %v40
    %v55 = vadd.f32 %v53, 1e-12
    %v56 = vadd.f32 %v54, 1e-12
    %v57 = vrsqrt.pop %v55
    %v58 = vrsqrt.pop %v56
    %v59 = vmul.f32 %v43, %v57
    %v60 = vmul.f32 %v44, %v58
    %v62 = vlaneseq
    %v63 = vshrl.u32 %v62, 7
    %v64 = vsub.s32 0, %v63
    %v65 = vrot.slane %v31, %v64
    %v67 = vmul.f32 %v59, %v65
    %v68 = vmul.f32 %v60, %v65
    %v70 = vlaneseq
    %v71 = vshrl.u32 %v70, 7
    %v72 = vsub.s32 0, %v71
    %v73 = vrot.slane %v32, %v72
    %v75 = vadd.f32 %v67, %v73
    %v76 = vadd.f32 %v68, %v73
    %v77 = vpack.c.bf16 %v76, %v75
    %v79 = vunpack.c.l.b16 %v77
    %v80 = vunpack.c.h.b16 %v77
    %v81 = vpack.c.b16 %v79, %v79
    %v82 = vpack.c.b16 %v80, %v80
    %vm85 = vcmask 257024
    %86 = vst.msk [vmem:[#allocation5] sm:$0xf] %vm85, %v81
    %87 = vst.msk [vmem:[#allocation5 + $0x4] sm:$0xf] %vm85, %v82
    // Predicated region
    $region18: #{tpu_custom_call.1} parent=1 // pred_check
      _
    $region19: #{tpu_custom_call.1} parent=1 // pred_check_branch
      %89 = sbr.rel (0) target = $region21
    $region20: #{tpu_custom_call.1} parent=1 // pred_region
      %s91 = ssub.s32 128, 128
      %92 = vsyncadd [#allocation4], %s91
      %s93 = sshll.u32 [#allocation5], 4
      %s94 = int_to_ptr.vmem [resolvable:$true] %s93
      %99 = dma.vmem_to_hbm [thread:$0]  %s94, 128, %s3, [#allocation4], 64, 64, 4
    $region21: #{tpu_custom_call.1} parent=1 // pred_fallthru
      _
    // Predicated region
    $region22: #{tpu_custom_call.1} parent=1 // pred_check
      _
    $region23: #{tpu_custom_call.1} parent=1 // pred_check_branch
      %101 = sbr.rel (0) target = $region25
    $region24: #{tpu_custom_call.1} parent=1 // pred_region
      %102 = dma.done [#allocation4], 128
    $region25: #{tpu_custom_call.1} parent=1 // pred_fallthru
      _
    %103 = vsyncpa [#allocation3], 1
    %104 = vsyncpa [#allocation4], 1

</llo_original>
